<compile_context>
chip_gen: v5e
topology: v5e:2x2
jax: 0.10.0
libtpu: 0.0.40
codegen_flags: <defaults>
</compile_context>

<pallas_src>
import functools

import jax
import jax.numpy as jnp
import numpy as np
from jax.experimental import pallas as pl
from jax.experimental.pallas import tpu as pltpu

BN_EPS = 1e-5
HIDDEN = 20
N_CLASSES = 2

# Batches whose activations fit comfortably in VMEM take the fully fused single-pass path.
_FUSED_BYTES_LIMIT = 2 << 20  # per-half+per-half total activation bytes


def _round_up(a, b):
    return (a + b - 1) // b * b


# ---------------------------------------------------------------------------
# Fused single-pass kernel (whole batch resident in VMEM): BN stats + apply +
# Linear(D,20) + ReLU + Linear(20,2).  x1/x2 read from HBM exactly once.
# ---------------------------------------------------------------------------
def _fused_kernel(x1_ref, x2_ref, g1_ref, be1_ref, g2_ref, be2_ref,
                  w1a_ref, w1b_ref, b1_ref, w2_ref, b2_ref, out_ref, *, n_rows):
    x1 = x1_ref[...].astype(jnp.float32)
    x2 = x2_ref[...].astype(jnp.float32)
    inv_n = jnp.float32(1.0 / n_rows)

    def norm(x, g_ref, be_ref):
        mean = jnp.sum(x, axis=0, keepdims=True) * inv_n
        var = jnp.sum(x * x, axis=0, keepdims=True) * inv_n - mean * mean  # biased variance
        inv_std = jax.lax.rsqrt(var + BN_EPS)
        scale = g_ref[...] * inv_std
        shift = be_ref[...] - mean * scale
        return x * scale + shift

    xn1 = norm(x1, g1_ref, be1_ref)
    xn2 = norm(x2, g2_ref, be2_ref)

    h = (jnp.dot(xn1, w1a_ref[...], preferred_element_type=jnp.float32)
         + jnp.dot(xn2, w1b_ref[...], preferred_element_type=jnp.float32)
         + b1_ref[...])
    h = jnp.maximum(h, 0.0)

    logits = jnp.dot(h, w2_ref[...], preferred_element_type=jnp.float32) + b2_ref[...]
    out_ref[...] = logits.astype(out_ref.dtype)


def _fused_forward(x1, x2, gamma1, beta1, gamma2, beta2, w1a, w1b, b1, w2, b2, n):
    D1 = x1.shape[1]
    D2 = x2.shape[1]
    D = D1 + D2
    f32 = jnp.float32

    def full(shape):
        return pl.BlockSpec(shape, lambda i, _s=len(shape): (0,) * _s)

    kern = functools.partial(_fused_kernel, n_rows=n)
    return pl.pallas_call(
        kern,
        out_shape=jax.ShapeDtypeStruct((n, N_CLASSES), f32),
        grid=(1,),
        in_specs=[full((n, D1)), full((n, D2)),
                  full((1, D1)), full((1, D1)), full((1, D2)), full((1, D2)),
                  full((D1, HIDDEN)), full((D2, HIDDEN)), full((1, HIDDEN)),
                  full((HIDDEN, N_CLASSES)), full((1, N_CLASSES))],
        out_specs=full((n, N_CLASSES)),
        compiler_params=pltpu.CompilerParams(dimension_semantics=("arbitrary",)),
        cost_estimate=pl.CostEstimate(
            flops=int(2 * n * D * HIDDEN + 2 * n * HIDDEN * N_CLASSES + 6 * n * D),
            transcendentals=0,
            bytes_accessed=int(4 * n * D + 4 * n * N_CLASSES)),
    )(x1, x2, gamma1, beta1, gamma2, beta2, w1a, w1b, b1, w2, b2)


# ---------------------------------------------------------------------------
# Pass 1: global BatchNorm statistics (per concat half), folded with gamma/beta
# into per-feature scale/shift:  xn = x * scale + shift.
# ---------------------------------------------------------------------------
def _bn_stats_kernel(x1_ref, x2_ref, g1_ref, be1_ref, g2_ref, be2_ref,
                     scale1_ref, shift1_ref, scale2_ref, shift2_ref,
                     s1, sq1, s2, sq2, *, n_rows, tile_n):
    i = pl.program_id(0)

    @pl.when(i == 0)
    def _():
        s1[...] = jnp.zeros_like(s1)
        sq1[...] = jnp.zeros_like(sq1)
        s2[...] = jnp.zeros_like(s2)
        sq2[...] = jnp.zeros_like(sq2)

    # Mask rows beyond the real batch (last, possibly ragged, tile reads padded garbage).
    row = jax.lax.broadcasted_iota(jnp.int32, (tile_n, 1), 0) + i * tile_n
    valid = row < n_rows

    x1 = jnp.where(valid, x1_ref[...].astype(jnp.float32), 0.0)
    x2 = jnp.where(valid, x2_ref[...].astype(jnp.float32), 0.0)

    s1[...] += jnp.sum(x1, axis=0, keepdims=True)
    sq1[...] += jnp.sum(x1 * x1, axis=0, keepdims=True)
    s2[...] += jnp.sum(x2, axis=0, keepdims=True)
    sq2[...] += jnp.sum(x2 * x2, axis=0, keepdims=True)

    @pl.when(i == pl.num_programs(0) - 1)
    def _():
        inv_n = jnp.float32(1.0 / n_rows)

        def finalize(s, sq, g, be):
            mean = s[...] * inv_n
            var = sq[...] * inv_n - mean * mean          # biased (training-mode) variance
            inv_std = jax.lax.rsqrt(var + BN_EPS)
            scale = g[...] * inv_std
            shift = be[...] - mean * scale
            return scale, shift

        sc1, sh1 = finalize(s1, sq1, g1_ref, be1_ref)
        scale1_ref[...] = sc1
        shift1_ref[...] = sh1
        sc2, sh2 = finalize(s2, sq2, g2_ref, be2_ref)
        scale2_ref[...] = sc2
        shift2_ref[...] = sh2


# ---------------------------------------------------------------------------
# Pass 2: apply BN (scale/shift) + Linear(D,20) + ReLU + Linear(20,2).
# Concat folded into a split first matmul; logits stored lane-dense as [2, T].
# ---------------------------------------------------------------------------
def _link_predictor_kernel(x1_ref, x2_ref, scale1_ref, shift1_ref,
                           scale2_ref, shift2_ref, w1a_ref, w1b_ref, b1_ref,
                           w2_ref, b2c_ref, out_ref):
    xn1 = x1_ref[...].astype(jnp.float32) * scale1_ref[...] + shift1_ref[...]
    xn2 = x2_ref[...].astype(jnp.float32) * scale2_ref[...] + shift2_ref[...]

    h = (jnp.dot(xn1, w1a_ref[...], preferred_element_type=jnp.float32)
         + jnp.dot(xn2, w1b_ref[...], preferred_element_type=jnp.float32)
         + b1_ref[...])
    h = jnp.maximum(h, 0.0)

    logits = jnp.dot(h, w2_ref[...], preferred_element_type=jnp.float32)          # [T, 2]
    out_ref[...] = (jnp.transpose(logits) + b2c_ref[...]).astype(out_ref.dtype)   # [2, T]


def _two_pass_forward(x1, x2, gamma1, beta1, gamma2, beta2, w1a, w1b, b1, w2, b2,
                      n, tile_n):
    D1 = x1.shape[1]
    D2 = x2.shape[1]
    D = D1 + D2
    f32 = jnp.float32

    n8 = _round_up(n, 8)
    if tile_n is None:
        # ~8 MiB budget for the double-buffered x1+x2 tiles, capped at 4096 rows.
        tile_n = max(128, min(4096, (8 << 20) // (8 * D)))
    if tile_n >= n8:
        tile = n8                                   # single tile = full (8-padded) batch
    else:
        tile = max(128, _round_up(tile_n, 128))     # multi-tile: lane-dense output blocks
    grid = pl.cdiv(n, tile)
    n_pad = grid * tile

    b2c = b2.reshape(N_CLASSES, 1)

    def feat_spec(d):
        return pl.BlockSpec((1, d), lambda i: (0, 0))

    # ---- Pass 1: global BN stats -> per-feature scale / shift -------------
    stats_kernel = functools.partial(_bn_stats_kernel, n_rows=n, tile_n=tile)
    scale1, shift1, scale2, shift2 = pl.pallas_call(
        stats_kernel,
        out_shape=(jax.ShapeDtypeStruct((1, D1), f32),
                   jax.ShapeDtypeStruct((1, D1), f32),
                   jax.ShapeDtypeStruct((1, D2), f32),
                   jax.ShapeDtypeStruct((1, D2), f32)),
        grid=(grid,),
        in_specs=[
            pl.BlockSpec((tile, D1), lambda i: (i, 0)),
            pl.BlockSpec((tile, D2), lambda i: (i, 0)),
            feat_spec(D1), feat_spec(D1), feat_spec(D2), feat_spec(D2),
        ],
        out_specs=(feat_spec(D1), feat_spec(D1), feat_spec(D2), feat_spec(D2)),
        scratch_shapes=[pltpu.VMEM((1, D1), f32), pltpu.VMEM((1, D1), f32),
                        pltpu.VMEM((1, D2), f32), pltpu.VMEM((1, D2), f32)],
        compiler_params=pltpu.CompilerParams(dimension_semantics=("arbitrary",)),
        cost_estimate=pl.CostEstimate(
            flops=int(4 * n * D), transcendentals=0,
            bytes_accessed=int(4 * n * D + 8 * 4 * D)),
    )(x1, x2, gamma1, beta1, gamma2, beta2)

    # ---- Pass 2: BN apply + MLP, lane-dense [2, n_pad] output --------------
    out_t = pl.pallas_call(
        _link_predictor_kernel,
        out_shape=jax.ShapeDtypeStruct((N_CLASSES, n_pad), f32),
        grid=(grid,),
        in_specs=[
            pl.BlockSpec((tile, D1), lambda i: (i, 0)),
            pl.BlockSpec((tile, D2), lambda i: (i, 0)),
            feat_spec(D1), feat_spec(D1), feat_spec(D2), feat_spec(D2),
            pl.BlockSpec((D1, HIDDEN), lambda i: (0, 0)),
            pl.BlockSpec((D2, HIDDEN), lambda i: (0, 0)),
            pl.BlockSpec((1, HIDDEN), lambda i: (0, 0)),
            pl.BlockSpec((HIDDEN, N_CLASSES), lambda i: (0, 0)),
            pl.BlockSpec((N_CLASSES, 1), lambda i: (0, 0)),
        ],
        out_specs=pl.BlockSpec((N_CLASSES, tile), lambda i: (0, i)),
        compiler_params=pltpu.CompilerParams(dimension_semantics=("parallel",)),
        cost_estimate=pl.CostEstimate(
            flops=int(2 * n * D * HIDDEN + 2 * n * HIDDEN * N_CLASSES + 4 * n * D),
            transcendentals=0,
            bytes_accessed=int(4 * n * D + 4 * n * N_CLASSES)),
    )(x1, x2, scale1, shift1, scale2, shift2, w1a, w1b, b1, w2, b2c)

    # Drop padded columns and restore the [N, 2] logits layout (tiny op).
    return out_t[:, :n].T


# ---------------------------------------------------------------------------
# Public wrapper.
# ---------------------------------------------------------------------------
def link_predictor_forward(x1, x2, params, *, tile_n=None, single_pass=None):
    N, D1 = x1.shape
    N2, D2 = x2.shape
    assert N == N2, "x1 and x2 must share the batch dimension"
    D = D1 + D2

    # Tiny parameter-side reshuffles (no activation data touched).
    gamma1 = params["gamma"][:, :D1]
    gamma2 = params["gamma"][:, D1:]
    beta1 = params["beta"][:, :D1]
    beta2 = params["beta"][:, D1:]
    w1a = params["w1"][:D1]
    w1b = params["w1"][D1:]
    b1 = params["b1"]
    w2 = params["w2"]
    b2 = params["b2"]

    if single_pass is None:
        single_pass = (N * D * 4) <= _FUSED_BYTES_LIMIT

    if single_pass:
        return _fused_forward(x1, x2, gamma1, beta1, gamma2, beta2,
                              w1a, w1b, b1, w2, b2, N)
    return _two_pass_forward(x1, x2, gamma1, beta1, gamma2, beta2,
                             w1a, w1b, b1, w2, b2, N, tile_n)


def init_params(key, input_dimensionality):
    k1, k2, k3, k4 = jax.random.split(key, 4)
    D = input_dimensionality
    return {
        "gamma": jnp.ones((1, D), jnp.float32),                       # BatchNorm1d weight
        "beta":  jnp.zeros((1, D), jnp.float32),                      # BatchNorm1d bias
        "w1": jax.random.normal(k1, (D, HIDDEN), jnp.float32) * 0.1,  # Linear(D,20).weight^T
        "b1": jax.random.normal(k2, (1, HIDDEN), jnp.float32) * 0.1,
        "w2": jax.random.normal(k3, (HIDDEN, N_CLASSES), jnp.float32) * 0.1,  # Linear(20,2).weight^T
        "b2": jax.random.normal(k4, (1, N_CLASSES), jnp.float32) * 0.1,
    }


def reference_forward(x1, x2, params):
    # Faithful to the PyTorch forward (training-mode BN, biased variance).
    x = jnp.concatenate([x1, x2], axis=1)
    mean = jnp.mean(x, axis=0, keepdims=True)
    var = jnp.mean((x - mean) ** 2, axis=0, keepdims=True)
    xn = (x - mean) / jnp.sqrt(var + BN_EPS) * params["gamma"] + params["beta"]
    h = jnp.maximum(xn @ params["w1"] + params["b1"], 0.0)
    return h @ params["w2"] + params["b2"]


if __name__ == "__main__":
    key = jax.random.PRNGKey(0)
    kx1, kx2, kx3, kx4, kp = jax.random.split(key, 5)

    half_dim = 16                          # each node embedding
    input_dimensionality = 2 * half_dim    # = 32 after (virtual) concat
    params = init_params(kp, input_dimensionality)

    # Case 1: small batch -> fused single-pass kernel.
    batch = 8
    x1 = jax.random.normal(kx1, (batch, half_dim), jnp.float32)
    x2 = jax.random.normal(kx2, (batch, half_dim), jnp.float32)
    out = jax.block_until_ready(link_predictor_forward(x1, x2, params))
    ref = reference_forward(x1, x2, params)
    assert out.shape == (batch, N_CLASSES)
    assert np.allclose(np.asarray(out), np.asarray(ref), atol=1e-4, rtol=1e-4)

    # Case 2: ragged batch through the tiled two-pass streaming pipeline (multi-step grid).
    batch2 = 300
    y1 = jax.random.normal(kx3, (batch2, half_dim), jnp.float32)
    y2 = jax.random.normal(kx4, (batch2, half_dim), jnp.float32)
    out2 = jax.block_until_ready(
        link_predictor_forward(y1, y2, params, tile_n=128, single_pass=False))
    ref2 = reference_forward(y1, y2, params)
    assert out2.shape == (batch2, N_CLASSES)
    assert np.allclose(np.asarray(out2), np.asarray(ref2), atol=1e-4, rtol=1e-4)

    print("KERNEL_OK")
</pallas_src>

<mosaic_0001>
module attributes {stable_mosaic.version = 11 : i64} {
  func.func @_fused_kernel(%arg0: i32, %arg1: memref<8x16xf32, #tpu.memory_space<vmem>>, %arg2: memref<8x16xf32, #tpu.memory_space<vmem>>, %arg3: memref<1x16xf32, #tpu.memory_space<vmem>>, %arg4: memref<1x16xf32, #tpu.memory_space<vmem>>, %arg5: memref<1x16xf32, #tpu.memory_space<vmem>>, %arg6: memref<1x16xf32, #tpu.memory_space<vmem>>, %arg7: memref<16x20xf32, #tpu.memory_space<vmem>>, %arg8: memref<16x20xf32, #tpu.memory_space<vmem>>, %arg9: memref<1x20xf32, #tpu.memory_space<vmem>>, %arg10: memref<20x2xf32, #tpu.memory_space<vmem>>, %arg11: memref<1x2xf32, #tpu.memory_space<vmem>>, %arg12: memref<8x2xf32, #tpu.memory_space<vmem>>) attributes {dimension_semantics = [#tpu.dimension_semantics<arbitrary>], iteration_bounds = array<i64: 1>, scalar_prefetch = 0 : i64, scratch_operands = 0 : i64, tpu.core_type = #tpu.core_type<tc>, window_params = [{pipeline_mode = #tpu.pipeline_mode<synchronous>, transform_indices = @transform_0, window_bounds = array<i64: 8, 16>}, {pipeline_mode = #tpu.pipeline_mode<synchronous>, transform_indices = @transform_1, window_bounds = array<i64: 8, 16>}, {pipeline_mode = #tpu.pipeline_mode<synchronous>, transform_indices = @transform_2, window_bounds = array<i64: 1, 16>}, {pipeline_mode = #tpu.pipeline_mode<synchronous>, transform_indices = @transform_3, window_bounds = array<i64: 1, 16>}, {pipeline_mode = #tpu.pipeline_mode<synchronous>, transform_indices = @transform_4, window_bounds = array<i64: 1, 16>}, {pipeline_mode = #tpu.pipeline_mode<synchronous>, transform_indices = @transform_5, window_bounds = array<i64: 1, 16>}, {pipeline_mode = #tpu.pipeline_mode<synchronous>, transform_indices = @transform_6, window_bounds = array<i64: 16, 20>}, {pipeline_mode = #tpu.pipeline_mode<synchronous>, transform_indices = @transform_7, window_bounds = array<i64: 16, 20>}, {pipeline_mode = #tpu.pipeline_mode<synchronous>, transform_indices = @transform_8, window_bounds = array<i64: 1, 20>}, {pipeline_mode = #tpu.pipeline_mode<synchronous>, transform_indices = @transform_9, window_bounds = array<i64: 20, 2>}, {pipeline_mode = #tpu.pipeline_mode<synchronous>, transform_indices = @transform_10, window_bounds = array<i64: 1, 2>}, {pipeline_mode = #tpu.pipeline_mode<synchronous>, transform_indices = @transform_11, window_bounds = array<i64: 8, 2>}]} {
    %c0 = arith.constant 0 : index
    %c0_0 = arith.constant 0 : index
    %0 = vector.load %arg1[%c0, %c0_0] : memref<8x16xf32, #tpu.memory_space<vmem>>, vector<8x16xf32>
    %c0_1 = arith.constant 0 : index
    %c0_2 = arith.constant 0 : index
    %1 = vector.load %arg2[%c0_1, %c0_2] : memref<8x16xf32, #tpu.memory_space<vmem>>, vector<8x16xf32>
    %cst = arith.constant dense<0.000000e+00> : vector<16xf32>
    %2 = vector.multi_reduction <add>, %0, %cst [0] : vector<8x16xf32> to vector<16xf32>
    %3 = vector.shape_cast %2 : vector<16xf32> to vector<1x16xf32>
    %cst_3 = arith.constant 1.250000e-01 : f32
    %4 = vector.broadcast %cst_3 : f32 to vector<1x16xf32>
    %5 = arith.mulf %3, %4 : vector<1x16xf32>
    %6 = arith.mulf %0, %0 : vector<8x16xf32>
    %cst_4 = arith.constant dense<0.000000e+00> : vector<16xf32>
    %7 = vector.multi_reduction <add>, %6, %cst_4 [0] : vector<8x16xf32> to vector<16xf32>
    %8 = vector.shape_cast %7 : vector<16xf32> to vector<1x16xf32>
    %cst_5 = arith.constant 1.250000e-01 : f32
    %9 = vector.broadcast %cst_5 : f32 to vector<1x16xf32>
    %10 = arith.mulf %8, %9 : vector<1x16xf32>
    %11 = arith.mulf %5, %5 : vector<1x16xf32>
    %12 = arith.subf %10, %11 : vector<1x16xf32>
    %cst_6 = arith.constant 9.99999974E-6 : f32
    %13 = vector.broadcast %cst_6 : f32 to vector<1x16xf32>
    %14 = arith.addf %12, %13 : vector<1x16xf32>
    %15 = math.rsqrt %14 : vector<1x16xf32>
    %c0_7 = arith.constant 0 : index
    %c0_8 = arith.constant 0 : index
    %16 = vector.load %arg3[%c0_7, %c0_8] : memref<1x16xf32, #tpu.memory_space<vmem>>, vector<1x16xf32>
    %17 = arith.mulf %16, %15 : vector<1x16xf32>
    %c0_9 = arith.constant 0 : index
    %c0_10 = arith.constant 0 : index
    %18 = vector.load %arg4[%c0_9, %c0_10] : memref<1x16xf32, #tpu.memory_space<vmem>>, vector<1x16xf32>
    %19 = arith.mulf %5, %17 : vector<1x16xf32>
    %20 = arith.subf %18, %19 : vector<1x16xf32>
    %21 = vector.broadcast %17 : vector<1x16xf32> to vector<8x16xf32>
    %22 = arith.mulf %0, %21 : vector<8x16xf32>
    %23 = vector.broadcast %20 : vector<1x16xf32> to vector<8x16xf32>
    %24 = arith.addf %22, %23 : vector<8x16xf32>
    %cst_11 = arith.constant dense<0.000000e+00> : vector<16xf32>
    %25 = vector.multi_reduction <add>, %1, %cst_11 [0] : vector<8x16xf32> to vector<16xf32>
    %26 = vector.shape_cast %25 : vector<16xf32> to vector<1x16xf32>
    %cst_12 = arith.constant 1.250000e-01 : f32
    %27 = vector.broadcast %cst_12 : f32 to vector<1x16xf32>
    %28 = arith.mulf %26, %27 : vector<1x16xf32>
    %29 = arith.mulf %1, %1 : vector<8x16xf32>
    %cst_13 = arith.constant dense<0.000000e+00> : vector<16xf32>
    %30 = vector.multi_reduction <add>, %29, %cst_13 [0] : vector<8x16xf32> to vector<16xf32>
    %31 = vector.shape_cast %30 : vector<16xf32> to vector<1x16xf32>
    %cst_14 = arith.constant 1.250000e-01 : f32
    %32 = vector.broadcast %cst_14 : f32 to vector<1x16xf32>
    %33 = arith.mulf %31, %32 : vector<1x16xf32>
    %34 = arith.mulf %28, %28 : vector<1x16xf32>
    %35 = arith.subf %33, %34 : vector<1x16xf32>
    %cst_15 = arith.constant 9.99999974E-6 : f32
    %36 = vector.broadcast %cst_15 : f32 to vector<1x16xf32>
    %37 = arith.addf %35, %36 : vector<1x16xf32>
    %38 = math.rsqrt %37 : vector<1x16xf32>
    %c0_16 = arith.constant 0 : index
    %c0_17 = arith.constant 0 : index
    %39 = vector.load %arg5[%c0_16, %c0_17] : memref<1x16xf32, #tpu.memory_space<vmem>>, vector<1x16xf32>
    %40 = arith.mulf %39, %38 : vector<1x16xf32>
    %c0_18 = arith.constant 0 : index
    %c0_19 = arith.constant 0 : index
    %41 = vector.load %arg6[%c0_18, %c0_19] : memref<1x16xf32, #tpu.memory_space<vmem>>, vector<1x16xf32>
    %42 = arith.mulf %28, %40 : vector<1x16xf32>
    %43 = arith.subf %41, %42 : vector<1x16xf32>
    %44 = vector.broadcast %40 : vector<1x16xf32> to vector<8x16xf32>
    %45 = arith.mulf %1, %44 : vector<8x16xf32>
    %46 = vector.broadcast %43 : vector<1x16xf32> to vector<8x16xf32>
    %47 = arith.addf %45, %46 : vector<8x16xf32>
    %c0_20 = arith.constant 0 : index
    %c0_21 = arith.constant 0 : index
    %48 = vector.load %arg7[%c0_20, %c0_21] : memref<16x20xf32, #tpu.memory_space<vmem>>, vector<16x20xf32>
    %cst_22 = arith.constant dense<0.000000e+00> : vector<8x20xf32>
    %49 = tpu.matmul %24, %48, %cst_22 {dimension_numbers = #tpu.dot_dimension_numbers<[1], [0], [0], [1], [0, 0, 1, 1], [], []>} : vector<8x16xf32>, vector<16x20xf32>, vector<8x20xf32> -> vector<8x20xf32>
    %c0_23 = arith.constant 0 : index
    %c0_24 = arith.constant 0 : index
    %50 = vector.load %arg8[%c0_23, %c0_24] : memref<16x20xf32, #tpu.memory_space<vmem>>, vector<16x20xf32>
    %cst_25 = arith.constant dense<0.000000e+00> : vector<8x20xf32>
    %51 = tpu.matmul %47, %50, %cst_25 {dimension_numbers = #tpu.dot_dimension_numbers<[1], [0], [0], [1], [0, 0, 1, 1], [], []>} : vector<8x16xf32>, vector<16x20xf32>, vector<8x20xf32> -> vector<8x20xf32>
    %52 = arith.addf %49, %51 : vector<8x20xf32>
    %c0_26 = arith.constant 0 : index
    %c0_27 = arith.constant 0 : index
    %53 = vector.load %arg9[%c0_26, %c0_27] : memref<1x20xf32, #tpu.memory_space<vmem>>, vector<1x20xf32>
    %54 = vector.broadcast %53 : vector<1x20xf32> to vector<8x20xf32>
    %55 = arith.addf %52, %54 : vector<8x20xf32>
    %cst_28 = arith.constant 0.000000e+00 : f32
    %56 = vector.broadcast %cst_28 : f32 to vector<8x20xf32>
    %57 = arith.maximumf %55, %56 : vector<8x20xf32>
    %c0_29 = arith.constant 0 : index
    %c0_30 = arith.constant 0 : index
    %58 = vector.load %arg10[%c0_29, %c0_30] : memref<20x2xf32, #tpu.memory_space<vmem>>, vector<20x2xf32>
    %cst_31 = arith.constant dense<0.000000e+00> : vector<8x2xf32>
    %59 = tpu.matmul %57, %58, %cst_31 {dimension_numbers = #tpu.dot_dimension_numbers<[1], [0], [0], [1], [0, 0, 1, 1], [], []>} : vector<8x20xf32>, vector<20x2xf32>, vector<8x2xf32> -> vector<8x2xf32>
    %c0_32 = arith.constant 0 : index
    %c0_33 = arith.constant 0 : index
    %60 = vector.load %arg11[%c0_32, %c0_33] : memref<1x2xf32, #tpu.memory_space<vmem>>, vector<1x2xf32>
    %61 = vector.broadcast %60 : vector<1x2xf32> to vector<8x2xf32>
    %62 = arith.addf %59, %61 : vector<8x2xf32>
    %c0_34 = arith.constant 0 : index
    %c0_35 = arith.constant 0 : index
    %63 = vector.load %arg12[%c0_34, %c0_35] : memref<8x2xf32, #tpu.memory_space<vmem>>, vector<8x2xf32>
    tpu.vector_store %arg12[%c0_34, %c0_35], %62 {strides = array<i32>} : memref<8x2xf32, #tpu.memory_space<vmem>>, vector<8x2xf32>,
    return
  }
  func.func @transform_0(%arg0: i32) -> (i32, i32) {
    %c0_i32 = arith.constant 0 : i32
    %c0_i32_0 = arith.constant 0 : i32
    %c0_i32_1 = arith.constant 0 : i32
    return %c0_i32, %c0_i32_0 : i32, i32
  }
  func.func @transform_1(%arg0: i32) -> (i32, i32) {
    %c0_i32 = arith.constant 0 : i32
    %c0_i32_0 = arith.constant 0 : i32
    %c0_i32_1 = arith.constant 0 : i32
    return %c0_i32, %c0_i32_0 : i32, i32
  }
  func.func @transform_2(%arg0: i32) -> (i32, i32) {
    %c0_i32 = arith.constant 0 : i32
    %c0_i32_0 = arith.constant 0 : i32
    %c0_i32_1 = arith.constant 0 : i32
    return %c0_i32, %c0_i32_0 : i32, i32
  }
  func.func @transform_3(%arg0: i32) -> (i32, i32) {
    %c0_i32 = arith.constant 0 : i32
    %c0_i32_0 = arith.constant 0 : i32
    %c0_i32_1 = arith.constant 0 : i32
    return %c0_i32, %c0_i32_0 : i32, i32
  }
  func.func @transform_4(%arg0: i32) -> (i32, i32) {
    %c0_i32 = arith.constant 0 : i32
    %c0_i32_0 = arith.constant 0 : i32
    %c0_i32_1 = arith.constant 0 : i32
    return %c0_i32, %c0_i32_0 : i32, i32
  }
  func.func @transform_5(%arg0: i32) -> (i32, i32) {
    %c0_i32 = arith.constant 0 : i32
    %c0_i32_0 = arith.constant 0 : i32
    %c0_i32_1 = arith.constant 0 : i32
    return %c0_i32, %c0_i32_0 : i32, i32
  }
  func.func @transform_6(%arg0: i32) -> (i32, i32) {
    %c0_i32 = arith.constant 0 : i32
    %c0_i32_0 = arith.constant 0 : i32
    %c0_i32_1 = arith.constant 0 : i32
    return %c0_i32, %c0_i32_0 : i32, i32
  }
  func.func @transform_7(%arg0: i32) -> (i32, i32) {
    %c0_i32 = arith.constant 0 : i32
    %c0_i32_0 = arith.constant 0 : i32
    %c0_i32_1 = arith.constant 0 : i32
    return %c0_i32, %c0_i32_0 : i32, i32
  }
  func.func @transform_8(%arg0: i32) -> (i32, i32) {
    %c0_i32 = arith.constant 0 : i32
    %c0_i32_0 = arith.constant 0 : i32
    %c0_i32_1 = arith.constant 0 : i32
    return %c0_i32, %c0_i32_0 : i32, i32
  }
  func.func @transform_9(%arg0: i32) -> (i32, i32) {
    %c0_i32 = arith.constant 0 : i32
    %c0_i32_0 = arith.constant 0 : i32
    %c0_i32_1 = arith.constant 0 : i32
    return %c0_i32, %c0_i32_0 : i32, i32
  }
  func.func @transform_10(%arg0: i32) -> (i32, i32) {
    %c0_i32 = arith.constant 0 : i32
    %c0_i32_0 = arith.constant 0 : i32
    %c0_i32_1 = arith.constant 0 : i32
    return %c0_i32, %c0_i32_0 : i32, i32
  }
  func.func @transform_11(%arg0: i32) -> (i32, i32) {
    %c0_i32 = arith.constant 0 : i32
    %c0_i32_0 = arith.constant 0 : i32
    %c0_i32_1 = arith.constant 0 : i32
    return %c0_i32, %c0_i32_0 : i32, i32
  }
}

</mosaic_0001>

<llo_original>
// kernel: tpu_custom_call.1
$region0: #{tpu_custom_call.1}
  #allocation0 [shape = 'u32[]', space=smem, size = 0x4, offset = 0x4, fixed_abs, tag = 'smem constant byte address 0x4 - core index']
  #allocation1 [shape = 'u32[72,128]{1,0:T(1,128)}', space=vmem, size = 0x9000, scoped, tag = 'internal scratch']
  %s0 = inlined_call_operand.hbm [shape: f32[8,16], index: 0, kind: input, shape index: {}]
  %s1 = inlined_call_operand.hbm [shape: f32[8,16], index: 1, kind: input, shape index: {}]
  %s2 = inlined_call_operand.hbm [shape: f32[1,16], index: 2, kind: input, shape index: {}]
  %s3 = inlined_call_operand.hbm [shape: f32[1,16], index: 3, kind: input, shape index: {}]
  %s4 = inlined_call_operand.hbm [shape: f32[1,16], index: 4, kind: input, shape index: {}]
  %s5 = inlined_call_operand.hbm [shape: f32[1,16], index: 5, kind: input, shape index: {}]
  %s6 = inlined_call_operand.vmem [shape: f32[16,20], index: 6, kind: input, shape index: {}]
  %s7 = inlined_call_operand.vmem [shape: f32[16,20], index: 7, kind: input, shape index: {}]
  %s8 = inlined_call_operand.hbm [shape: f32[1,20], index: 8, kind: input, shape index: {}]
  %s9 = inlined_call_operand.vmem [shape: f32[20,2], index: 9, kind: input, shape index: {}]
  %s10 = inlined_call_operand.vmem [shape: f32[1,2], index: 10, kind: input, shape index: {}]
  %s11 = inlined_call_operand.vmem [shape: f32[8,2], index: 11, kind: output, shape index: {}]
  %s12 = sld [smem:[#allocation0]]
  $region82: #{tpu_custom_call.1} parent=0
    _
  %s14 = ssub.s32 1, %s12
  %s15 = scalar_select 0, %s14, %s12
  $region1: #{tpu_custom_call.1} parent=0
    #allocation2 [shape = 'u8[4096]{0}', space=vmem, size = 0x1000, scoped, tag = 'input window, operand 0, single buffered']
    #allocation3 [shape = 's32[1]{0}', space=sflag, size = 0x4, scoped, tag = 'scoped memory for tpu_custom_call.1']
    #allocation4 [shape = 'u8[4096]{0}', space=vmem, size = 0x1000, scoped, tag = 'input window, operand 1, single buffered']
    #allocation5 [shape = 's32[1]{0}', space=sflag, size = 0x4, scoped, tag = 'scoped memory for tpu_custom_call.1']
    #allocation6 [shape = 'u8[512]{0}', space=vmem, size = 0x400, scoped, tag = 'input window, operand 2, single buffered']
    #allocation7 [shape = 'u8[512]{0}', space=vmem, size = 0x400, scoped, tag = 'input window, operand 3, single buffered']
    #allocation8 [shape = 's32[1]{0}', space=sflag, size = 0x4, scoped, tag = 'scoped memory for tpu_custom_call.1']
    #allocation9 [shape = 'u8[512]{0}', space=vmem, size = 0x400, scoped, tag = 'input window, operand 4, single buffered']
    #allocation10 [shape = 'u8[512]{0}', space=vmem, size = 0x400, scoped, tag = 'input window, operand 5, single buffered']
    #allocation11 [shape = 's32[1]{0}', space=sflag, size = 0x4, scoped, tag = 'scoped memory for tpu_custom_call.1']
    #allocation12 [shape = 'u8[512]{0}', space=vmem, size = 0x400, scoped, tag = 'input window, operand 8, single buffered']
    %16 = vsyncpa [#allocation3], 0
    %17 = vsyncpa [#allocation5], 0
    %18 = vsyncpa [#allocation8], 0
    %19 = vsyncpa [#allocation11], 0
    // Predicated region
    $region2: #{tpu_custom_call.1} parent=1 // pred_check
      _
    $region3: #{tpu_custom_call.1} parent=1 // pred_check_branch
      %21 = sbr.rel (0) target = $region5
    $region4: #{tpu_custom_call.1} parent=1 // pred_region
      %23 = vsyncadd [#allocation3], 0
      %s25 = sshll.u32 %s0, 4
      %s26 = int_to_ptr.hbm [resolvable:$true] %s25
      %s27 = sshll.u32 [#allocation2], 4
      %s28 = int_to_ptr.vmem [resolvable:$true] %s27
      %30 = dma.hbm_to_vmem [thread:$0]  %s26, 128, %s28, [#allocation3]
    $region5: #{tpu_custom_call.1} parent=1 // pred_fallthru
      _
    // Predicated region
    $region6: #{tpu_custom_call.1} parent=1 // pred_check
      _
    $region7: #{tpu_custom_call.1} parent=1 // pred_check_branch
      %32 = sbr.rel (0) target = $region9
    $region8: #{tpu_custom_call.1} parent=1 // pred_region
      %34 = vsyncadd [#allocation5], 0
      %s36 = sshll.u32 %s1, 4
      %s37 = int_to_ptr.hbm [resolvable:$true] %s36
      %s38 = sshll.u32 [#allocation4], 4
      %s39 = int_to_ptr.vmem [resolvable:$true] %s38
      %41 = dma.hbm_to_vmem [thread:$0]  %s37, 128, %s39, [#allocation5]
    $region9: #{tpu_custom_call.1} parent=1 // pred_fallthru
      _
    // Predicated region
    $region10: #{tpu_custom_call.1} parent=1 // pred_check
      _
    $region11: #{tpu_custom_call.1} parent=1 // pred_check_branch
      %43 = sbr.rel (0) target = $region13
    $region12: #{tpu_custom_call.1} parent=1 // pred_region
      %45 = vsyncadd [#allocation5], 0
      %s47 = sshll.u32 %s2, 4
      %s48 = int_to_ptr.hbm [resolvable:$true] %s47
      %s49 = sshll.u32 [#allocation6], 4
      %s50 = int_to_ptr.vmem [resolvable:$true] %s49
      %52 = dma.hbm_to_vmem [thread:$0]  %s48, 16, %s50, [#allocation5]
    $region13: #{tpu_custom_call.1} parent=1 // pred_fallthru
      _
    // Predicated region
    $region14: #{tpu_custom_call.1} parent=1 // pred_check
      _
    $region15: #{tpu_custom_call.1} parent=1 // pred_check_branch
      %54 = sbr.rel (0) target = $region17
    $region16: #{tpu_custom_call.1} parent=1 // pred_region
      %56 = vsyncadd [#allocation8], 0
      %s58 = sshll.u32 %s3, 4
      %s59 = int_to_ptr.hbm [resolvable:$true] %s58
      %s60 = sshll.u32 [#allocation7], 4
      %s61 = int_to_ptr.vmem [resolvable:$true] %s60
      %63 = dma.hbm_to_vmem [thread:$0]  %s59, 16, %s61, [#allocation8]
    $region17: #{tpu_custom_call.1} parent=1 // pred_fallthru
      _
    // Predicated region
    $region18: #{tpu_custom_call.1} parent=1 // pred_check
      _
    $region19: #{tpu_custom_call.1} parent=1 // pred_check_branch
      %65 = sbr.rel (0) target = $region21
    $region20: #{tpu_custom_call.1} parent=1 // pred_region
      %67 = vsyncadd [#allocation8], 0
      %s69 = sshll.u32 %s4, 4
      %s70 = int_to_ptr.hbm [resolvable:$true] %s69
      %s71 = sshll.u32 [#allocation9], 4
      %s72 = int_to_ptr.vmem [resolvable:$true] %s71
      %74 = dma.hbm_to_vmem [thread:$0]  %s70, 16, %s72, [#allocation8]
    $region21: #{tpu_custom_call.1} parent=1 // pred_fallthru
      _
    // Predicated region
    $region22: #{tpu_custom_call.1} parent=1 // pred_check
      _
    $region23: #{tpu_custom_call.1} parent=1 // pred_check_branch
      %76 = sbr.rel (0) target = $region25
    $region24: #{tpu_custom_call.1} parent=1 // pred_region
      %78 = vsyncadd [#allocation11], 0
      %s80 = sshll.u32 %s5, 4
      %s81 = int_to_ptr.hbm [resolvable:$true] %s80
      %s82 = sshll.u32 [#allocation10], 4
      %s83 = int_to_ptr.vmem [resolvable:$true] %s82
      %85 = dma.hbm_to_vmem [thread:$0]  %s81, 16, %s83, [#allocation11]
    $region25: #{tpu_custom_call.1} parent=1 // pred_fallthru
      _
    // Predicated region
    $region26: #{tpu_custom_call.1} parent=1 // pred_check
      _
    $region27: #{tpu_custom_call.1} parent=1 // pred_check_branch
      %87 = sbr.rel (0) target = $region29
    $region28: #{tpu_custom_call.1} parent=1 // pred_region
      _
    $region29: #{tpu_custom_call.1} parent=1 // pred_fallthru
      _
    // Predicated region
    $region30: #{tpu_custom_call.1} parent=1 // pred_check
      _
    $region31: #{tpu_custom_call.1} parent=1 // pred_check_branch
      %89 = sbr.rel (0) target = $region33
    $region32: #{tpu_custom_call.1} parent=1 // pred_region
      _
    $region33: #{tpu_custom_call.1} parent=1 // pred_fallthru
      _
    // Predicated region
    $region34: #{tpu_custom_call.1} parent=1 // pred_check
      _
    $region35: #{tpu_custom_call.1} parent=1 // pred_check_branch
      %91 = sbr.rel (0) target = $region37
    $region36: #{tpu_custom_call.1} parent=1 // pred_region
      %93 = vsyncadd [#allocation11], 0
      %s95 = sshll.u32 %s8, 4
      %s96 = int_to_ptr.hbm [resolvable:$true] %s95
      %s97 = sshll.u32 [#allocation12], 4
      %s98 = int_to_ptr.vmem [resolvable:$true] %s97
      %100 = dma.hbm_to_vmem [thread:$0]  %s96, 16, %s98, [#allocation11]
    $region37: #{tpu_custom_call.1} parent=1 // pred_fallthru
      _
    // Predicated region
    $region38: #{tpu_custom_call.1} parent=1 // pred_check
      _
    $region39: #{tpu_custom_call.1} parent=1 // pred_check_branch
      %102 = sbr.rel (0) target = $region41
    $region40: #{tpu_custom_call.1} parent=1 // pred_region
      _
    $region41: #{tpu_custom_call.1} parent=1 // pred_fallthru
      _
    // Predicated region
    $region42: #{tpu_custom_call.1} parent=1 // pred_check
      _
    $region43: #{tpu_custom_call.1} parent=1 // pred_check_branch
      %104 = sbr.rel (0) target = $region45
    $region44: #{tpu_custom_call.1} parent=1 // pred_region
      _
    $region45: #{tpu_custom_call.1} parent=1 // pred_fallthru
      _
    // Predicated region
    $region46: #{tpu_custom_call.1} parent=1 // pred_check
      _
    $region47: #{tpu_custom_call.1} parent=1 // pred_check_branch
      %106 = sbr.rel (0) target = $region49
    $region48: #{tpu_custom_call.1} parent=1 // pred_region
      %108 = dma.done [#allocation3], 128
    $region49: #{tpu_custom_call.1} parent=1 // pred_fallthru
      _
    // Predicated region
    $region50: #{tpu_custom_call.1} parent=1 // pred_check
      _
    $region51: #{tpu_custom_call.1} parent=1 // pred_check_branch
      %110 = sbr.rel (0) target = $region53
    $region52: #{tpu_custom_call.1} parent=1 // pred_region
      %112 = dma.done [#allocation5], 128
    $region53: #{tpu_custom_call.1} parent=1 // pred_fallthru
      _
    // Predicated region
    $region54: #{tpu_custom_call.1} parent=1 // pred_check
      _
    $region55: #{tpu_custom_call.1} parent=1 // pred_check_branch
      %114 = sbr.rel (0) target = $region57
    $region56: #{tpu_custom_call.1} parent=1 // pred_region
      %116 = dma.done [#allocation5], 16
    $region57: #{tpu_custom_call.1} parent=1 // pred_fallthru
      _
    // Predicated region
    $region58: #{tpu_custom_call.1} parent=1 // pred_check
      _
    $region59: #{tpu_custom_call.1} parent=1 // pred_check_branch
      %118 = sbr.rel (0) target = $region61
    $region60: #{tpu_custom_call.1} parent=1 // pred_region
      %120 = dma.done [#allocation8], 16
    $region61: #{tpu_custom_call.1} parent=1 // pred_fallthru
      _
    // Predicated region
    $region62: #{tpu_custom_call.1} parent=1 // pred_check
      _
    $region63: #{tpu_custom_call.1} parent=1 // pred_check_branch
      %122 = sbr.rel (0) target = $region65
    $region64: #{tpu_custom_call.1} parent=1 // pred_region
      %124 = dma.done [#allocation8], 16
    $region65: #{tpu_custom_call.1} parent=1 // pred_fallthru
      _
    // Predicated region
    $region66: #{tpu_custom_call.1} parent=1 // pred_check
      _
    $region67: #{tpu_custom_call.1} parent=1 // pred_check_branch
      %126 = sbr.rel (0) target = $region69
    $region68: #{tpu_custom_call.1} parent=1 // pred_region
      %128 = dma.done [#allocation11], 16
    $region69: #{tpu_custom_call.1} parent=1 // pred_fallthru
      _
    // Predicated region
    $region70: #{tpu_custom_call.1} parent=1 // pred_check
      _
    $region71: #{tpu_custom_call.1} parent=1 // pred_check_branch
      %130 = sbr.rel (0) target = $region73
    $region72: #{tpu_custom_call.1} parent=1 // pred_region
      %132 = dma.done [#allocation11], 16
    $region73: #{tpu_custom_call.1} parent=1 // pred_fallthru
      _
    %v133 = vld [vmem:[#allocation2] sm:$0xff]
    %v134 = vld [vmem:[#allocation4] sm:$0xff]
    %vm135 = vcmask 130048
    %v136 = vsel %vm135, %v133, 0.0
    %v137 = vrot.slane %v136, 4
    %v138 = vadd.f32 %v136, %v137
    %v139 = vrot.slane %v138, 2
    %v140 = vadd.f32 %v138, %v139
    %v141 = vrot.slane %v140, 1
    %v142 = vadd.f32 %v140, %v141
    %v143 = vmul.f32 %v142, 0.125
    %v144 = vmul.f32 %v133, %v133
    %v145 = vsel %vm135, %v144, 0.0
    %v146 = vrot.slane %v145, 4
    %v147 = vadd.f32 %v145, %v146
    %v148 = vrot.slane %v147, 2
    %v149 = vadd.f32 %v147, %v148
    %v150 = vrot.slane %v149, 1
    %v151 = vadd.f32 %v149, %v150
    %v152 = vmul.f32 %v151, 0.125
    %v153 = vmul.f32 %v143, %v143
    %v154 = vsub.f32 %v152, %v153
    %v155 = vadd.f32 %v154, 1e-05
    %v156 = vrsqrt.pop %v155
    %v157 = vmul.f32 %v156, %v155
    %v158 = vmul.f32 %v157, %v156
    %v159 = vmul.f32 0.5, %v158
    %v160 = vsub.f32 1.5, %v159
    %v161 = vmul.f32 %v156, %v160
    %vm162 = vweird.f32 %v155
    %vm163 = vweird.f32 %v156
    %vm164 = vmor %vm162, %vm163
    %v165 = vsel %vm164, %v156, %v161
    %v166 = vld [vmem:[#allocation6] sm:$0x1]
    %v167 = vmul.f32 %v166, %v165
    %v168 = vld [vmem:[#allocation7] sm:$0x1]
    %v169 = vmul.f32 %v143, %v167
    %v170 = vsub.f32 %v168, %v169
    %v172 = vperm.slane %v167, 0
    %v174 = vmul.f32 %v133, %v172
    %v176 = vperm.slane %v170, 0
    %v178 = vadd.f32 %v174, %v176
    %v179 = vsel %vm135, %v134, 0.0
    %v180 = vrot.slane %v179, 4
    %v181 = vadd.f32 %v179, %v180
    %v182 = vrot.slane %v181, 2
    %v183 = vadd.f32 %v181, %v182
    %v184 = vrot.slane %v183, 1
    %v185 = vadd.f32 %v183, %v184
    %v186 = vmul.f32 %v185, 0.125
    %v187 = vmul.f32 %v134, %v134
    %v188 = vsel %vm135, %v187, 0.0
    %v189 = vrot.slane %v188, 4
    %v190 = vadd.f32 %v188, %v189
    %v191 = vrot.slane %v190, 2
    %v192 = vadd.f32 %v190, %v191
    %v193 = vrot.slane %v192, 1
    %v194 = vadd.f32 %v192, %v193
    %v195 = vmul.f32 %v194, 0.125
    %v196 = vmul.f32 %v186, %v186
    %v197 = vsub.f32 %v195, %v196
    %v198 = vadd.f32 %v197, 1e-05
    %v199 = vrsqrt.pop %v198
    %v200 = vmul.f32 %v199, %v198
    %v201 = vmul.f32 %v200, %v199
    %v202 = vmul.f32 0.5, %v201
    %v203 = vsub.f32 1.5, %v202
    %v204 = vmul.f32 %v199, %v203
    %vm205 = vweird.f32 %v198
    %vm206 = vweird.f32 %v199
    %vm207 = vmor %vm205, %vm206
    %v208 = vsel %vm207, %v199, %v204
    %v209 = vld [vmem:[#allocation9] sm:$0x1]
    %v210 = vmul.f32 %v209, %v208
    %v211 = vld [vmem:[#allocation10] sm:$0x1]
    %v212 = vmul.f32 %v186, %v210
    %v213 = vsub.f32 %v211, %v212
    %v215 = vperm.slane %v210, 0
    %v217 = vmul.f32 %v134, %v215
    %v219 = vperm.slane %v213, 0
    %v221 = vadd.f32 %v217, %v219
    %v222 = vld [vmem:[%s6] sm:$0xff]
    %v223 = vld [vmem:[%s6 + $0x8] sm:$0xff]
    %v224 = vld [vmem:[%s7] sm:$0xff]
    %v225 = vld [vmem:[%s7 + $0x8] sm:$0xff]
    %v227 = vsel %vm135, %v221, 0
    %229 = vmatpush.msra.mxu0 0.0
    %230 = vmatpush.msra.mxu0 0.0
    %231 = vmatpush.msra.mxu0 0.0
    %232 = vmatpush.msra.mxu0 0.0
    %233 = vmatpush.msra.mxu0 0.0
    %234 = vmatpush.msra.mxu0 0.0
    %235 = vmatpush.msra.mxu0 0.0
    %236 = vmatpush.msra.mxu0 0.0
    %237 = vmatpush.msra.mxu0 0.0
    %238 = vmatpush.msra.mxu0 0.0
    %239 = vmatpush.msra.mxu0 0.0
    %240 = vmatpush.msra.mxu0 0.0
    %241 = vmatpush.msra.mxu0 0.0
    %242 = vmatpush.msra.mxu0 0.0
    %243 = vmatpush.msra.mxu0 %v225
    %244 = vmatpush.msra.mxu0 %v224
    %245 = vmatmul.f32.gmra.mxu0 %v227
    %v246 = vpop.f32.mrf.mxu0
    %v247 = vadd.f32 0.0, %v246
    %248 = vdwg.mxu0
    %v250 = vsel %vm135, %v178, 0
    %252 = vmatpush.msra.mxu0 0.0
    %253 = vmatpush.msra.mxu0 0.0
    %254 = vmatpush.msra.mxu0 0.0
    %255 = vmatpush.msra.mxu0 0.0
    %256 = vmatpush.msra.mxu0 0.0
    %257 = vmatpush.msra.mxu0 0.0
    %258 = vmatpush.msra.mxu0 0.0
    %259 = vmatpush.msra.mxu0 0.0
    %260 = vmatpush.msra.mxu0 0.0
    %261 = vmatpush.msra.mxu0 0.0
    %262 = vmatpush.msra.mxu0 0.0
    %263 = vmatpush.msra.mxu0 0.0
    %264 = vmatpush.msra.mxu0 0.0
    %265 = vmatpush.msra.mxu0 0.0
    %266 = vmatpush.msra.mxu0 %v223
    %267 = vmatpush.msra.mxu0 %v222
    %268 = vmatmul.f32.gmra.mxu0 %v250
    %v269 = vpop.f32.mrf.mxu0
    %v270 = vadd.f32 %v247, %v269
    %271 = vdwg.mxu0
    %v272 = vld [vmem:[#allocation12] sm:$0x1]
    %v274 = vperm.slane %v272, 0
    %v276 = vadd.f32 %v270, %v274
    %v277 = vmax.f32 %v276, 0.0
    %v278 = vld [vmem:[%s9] sm:$0xff]
    %v279 = vld [vmem:[%s9 + $0x8] sm:$0xff]
    %v280 = vld [vmem:[%s9 + $0x10] sm:$0xf]
    %v281 = vld [vmem:[%s10] sm:$0x1]
    %v283 = vperm.slane %v281, 0
    %vm285 = vcmask 162816
    %v287 = vsel %vm285, %v277, 0
    %vm289 = vcmask 1043456
    %v291 = vsel %vm289, %v280, 0
    %293 = vmatpush.msra.mxu0 0.0
    %294 = vmatpush.msra.mxu0 0.0
    %295 = vmatpush.msra.mxu0 0.0
    %296 = vmatpush.msra.mxu0 0.0
    %297 = vmatpush.msra.mxu0 0.0
    %298 = vmatpush.msra.mxu0 0.0
    %299 = vmatpush.msra.mxu0 0.0
    %300 = vmatpush.msra.mxu0 0.0
    %301 = vmatpush.msra.mxu0 0.0
    %302 = vmatpush.msra.mxu0 0.0
    %303 = vmatpush.msra.mxu0 0.0
    %304 = vmatpush.msra.mxu0 0.0
    %305 = vmatpush.msra.mxu0 0.0
    %306 = vmatpush.msra.mxu0 %v291
    %307 = vmatpush.msra.mxu0 %v279
    %308 = vmatpush.msra.mxu0 %v278
    %309 = vmatmul.f32.gmra.mxu0 %v287
    %v310 = vpop.f32.mrf.mxu0
    %v311 = vadd.f32 %v283, %v310
    %312 = vdwg.mxu0
    %vm313 = vcmask 15360
    %314 = vst.msk [vmem:[%s11] sm:$0xff] %vm313, %v311
    // Predicated region
    $region74: #{tpu_custom_call.1} parent=1 // pred_check
      _
    $region75: #{tpu_custom_call.1} parent=1 // pred_check_branch
      %316 = sbr.rel (0) target = $region77
    $region76: #{tpu_custom_call.1} parent=1 // pred_region
      _
    $region77: #{tpu_custom_call.1} parent=1 // pred_fallthru
      _
    // Predicated region
    $region78: #{tpu_custom_call.1} parent=1 // pred_check
      _
    $region79: #{tpu_custom_call.1} parent=1 // pred_check_branch
      %318 = sbr.rel (0) target = $region81
    $region80: #{tpu_custom_call.1} parent=1 // pred_region
      _
    $region81: #{tpu_custom_call.1} parent=1 // pred_fallthru
      _
    %319 = vsyncpa [#allocation3], 1
    %320 = vsyncpa [#allocation5], 1
    %321 = vsyncpa [#allocation8], 1
    %322 = vsyncpa [#allocation11], 1

</llo_original>
